<compile_context>
chip_gen: v6e
topology: v6e:2x2x1
jax: 0.10.0
libtpu: 0.0.40
codegen_flags: <defaults>
</compile_context>

<pallas_src>
import functools

import jax
import jax.numpy as jnp
from jax.experimental import pallas as pl
from jax.experimental.pallas import tpu as pltpu

LANES = 128


def _round_up(x, m):
    return ((x + m - 1) // m) * m


def _default_num_chunks():
    # Two TensorCores per chip only on v7x; on single-TC v5e/v6e the "parallel"
    # chunk axis is just a serial outer loop, so default to 1 there.
    try:
        kind = jax.devices()[0].device_kind.lower()
    except Exception:
        return 1
    return 2 if "v7" in kind else 1


def _silog_partial_kernel(n_ref, est_ref, gt_ref, m_ref, out_ref, *, last_block):
    """Accumulate per-lane partial sums of [mask count, d, d^2] into out_ref.

    out_ref block: (1, 3, 8, 128) f32; its block index depends only on the outer
    ("parallel") grid axis, so it stays resident across the inner ("arbitrary")
    axis and acts as the accumulator.
    """
    step = pl.program_id(1)

    @pl.when(step == 0)
    def _init():
        out_ref[...] = jnp.zeros_like(out_ref)

    block_rows = est_ref.shape[0]
    block_idx = pl.program_id(0) * pl.num_programs(1) + step

    # Integer-domain mask test; converted to f32 exactly once (inside _accumulate).
    m_nonzero = m_ref[...] != 0

    def _accumulate(valid):
        vf = valid.astype(jnp.float32)
        # log applied only where mask is true (mirrors torch.log(x[mask])); invalid
        # lanes see log(1) = 0 and are additionally zeroed by the mask multiply, so
        # garbage in partial edge blocks never contributes.  Inputs are streamed in
        # their native dtype (e.g. bf16) and upcast here, after the load.
        log_gt = jnp.log(jnp.where(valid, gt_ref[...].astype(jnp.float32), 1.0))
        log_est = jnp.log(jnp.where(valid, est_ref[...].astype(jnp.float32), 1.0))
        d = vf * (log_est - log_gt)
        # Reduce the (block_rows, 128) tile to (8, 128) with pure VPU adds (no
        # cross-lane XLU work); the reshape only groups whole (8,128) sublane tiles
        # so no VMEM copy should be materialized.  Final cross-lane reduction is in
        # the wrapper.
        out_ref[0, 0, :, :] = out_ref[0, 0, :, :] + jnp.sum(vf.reshape(-1, 8, LANES), axis=0)
        out_ref[0, 1, :, :] = out_ref[0, 1, :, :] + jnp.sum(d.reshape(-1, 8, LANES), axis=0)
        out_ref[0, 2, :, :] = out_ref[0, 2, :, :] + jnp.sum((d * d).reshape(-1, 8, LANES), axis=0)

    # Interior blocks: no ragged-tail index math (saves ~7-8 VALU ops/elem; a real
    # win on v7x where VALU can become the binding unit).
    @pl.when(block_idx < last_block)
    def _full():
        _accumulate(m_nonzero)

    # Last real block, plus any clamped duplicate block when total_blocks is not
    # divisible by num_chunks: mask by global element index so padded / repeated
    # lanes contribute nothing.
    @pl.when(block_idx >= last_block)
    def _tail():
        row = jax.lax.broadcasted_iota(jnp.int32, (block_rows, LANES), 0)
        lane = jax.lax.broadcasted_iota(jnp.int32, (block_rows, LANES), 1)
        gidx = (row + block_idx * block_rows) * LANES + lane
        _accumulate(jnp.logical_and(m_nonzero, gidx < n_ref[0]))


def silog_loss_multiscale(depth_est, low1, low2, low3, depth_gt, mask,
                          variance_focus=0.85, block_rows=4096, num_chunks=None):
    # In the PyTorch module 1 // 4 == 1 // 16 == 1 // 64 == 0, so loss2/3/4 never
    # contribute to the returned value; low1/low2/low3 are not read at all.
    # TODO(synk): if the intended weights were 0.25 / 0.0625 / 0.015625 the
    # low-resolution streams would need to be added back into the kernel.
    del low1, low2, low3

    n = depth_est.size
    est = depth_est.reshape(-1)   # native dtype; upcast happens in-kernel
    gt = depth_gt.reshape(-1)
    m = mask.reshape(-1)
    if m.dtype == jnp.bool_:
        # TODO(synk): stream the bool mask directly once i1 memrefs are verified on
        # all target generations; the bool->int8 astype costs an extra ~2 B/elem pass.
        m = m.astype(jnp.int8)
    elif m.dtype != jnp.int8:
        m = (m != 0).astype(jnp.int8)

    rows = pl.cdiv(n, LANES)
    pad = rows * LANES - n
    if pad:  # only when numel % 128 != 0 (rare for depth maps); otherwise no copy
        est = jnp.pad(est, (0, pad), constant_values=1)
        gt = jnp.pad(gt, (0, pad), constant_values=1)
        m = jnp.pad(m, (0, pad))
    est = est.reshape(rows, LANES)
    gt = gt.reshape(rows, LANES)
    m = m.reshape(rows, LANES)

    # Row tile: multiple of 32 (int8 min sublane tile; also covers bf16/f32 and the
    # in-kernel reshape(-1, 8, 128)).  4096 rows -> ~4.5 MiB/step (f32 inputs),
    # ~9 MiB double-buffered VMEM.
    block_rows = max(32, min(_round_up(int(block_rows), 32), _round_up(rows, 32)))
    total_blocks = pl.cdiv(rows, block_rows)
    if num_chunks is None:
        num_chunks = _default_num_chunks()
    num_chunks = max(1, min(int(num_chunks), total_blocks))
    steps = pl.cdiv(total_blocks, num_chunks)

    # Global indices are computed in int32 inside the kernel.
    assert num_chunks * steps * block_rows * LANES < 2 ** 31, \
        "input too large for int32 global indexing"

    n_arr = jnp.array([n], dtype=jnp.int32)

    def in_idx(p, i, n_sref):
        # Clamp so the tail chunk never requests a block wholly past the array end
        # when total_blocks % num_chunks != 0; the in-kernel gidx mask zeroes any
        # duplicated contribution from the clamped block.
        return (jnp.minimum(p * steps + i, total_blocks - 1), 0)

    data_spec = pl.BlockSpec((block_rows, LANES), in_idx)
    kernel = functools.partial(_silog_partial_kernel, last_block=total_blocks - 1)

    partials = pl.pallas_call(
        kernel,
        out_shape=jax.ShapeDtypeStruct((num_chunks, 3, 8, LANES), jnp.float32),
        grid_spec=pltpu.PrefetchScalarGridSpec(
            num_scalar_prefetch=1,
            grid=(num_chunks, steps),
            in_specs=[data_spec, data_spec, data_spec],
            out_specs=pl.BlockSpec((1, 3, 8, LANES),
                                   lambda p, i, n_sref: (p, 0, 0, 0)),
        ),
        compiler_params=pltpu.CompilerParams(
            dimension_semantics=("parallel", "arbitrary"),
            vmem_limit_bytes=32 * 1024 * 1024),
    )(n_arr, est, gt, m)

    # Single tiny XLA reduce for the epilogue.
    sums = jnp.sum(partials, axis=(0, 2, 3))
    cnt, s, ss = sums[0], sums[1], sums[2]
    mean_d = s / cnt
    mean_d2 = ss / cnt
    # Matches PyTorch exactly: no clamp before sqrt; an all-false mask yields NaN
    # upstream as well.
    return jnp.sqrt(mean_d2 - variance_focus * mean_d ** 2) * 10.0


def _reference(depth_est, low1, low2, low3, depth_gt, mask, variance_focus):
    cnt = jnp.sum(mask.astype(jnp.float32))
    log_gt = jnp.log(jnp.where(mask, depth_gt, 1.0))

    def one(x):
        d = jnp.where(mask, jnp.log(jnp.where(mask, x, 1.0)) - log_gt, 0.0)
        mean_d = jnp.sum(d) / cnt
        mean_d2 = jnp.sum(d * d) / cnt
        return jnp.sqrt(mean_d2 - variance_focus * mean_d ** 2) * 10.0

    l1, l2, l3, l4 = one(depth_est), one(low1), one(low2), one(low3)
    return l1 + (1 // 4) * l2 + (1 // 16) * l3 + (1 // 64) * l4


def _check(shape, key, rtol=1e-4, atol=1e-5, **kw):
    k1, k2, k3, k4, k5 = jax.random.split(key, 5)

    def positive(k):
        return jax.random.uniform(k, shape, jnp.float32, minval=0.1, maxval=10.0)

    depth_est, low1, low2, low3, depth_gt = (positive(k) for k in (k1, k2, k3, k4, k5))
    mask = depth_gt > 1.0  # boolean mask, same shape as depth_gt
    variance_focus = 0.85

    loss = jax.block_until_ready(
        silog_loss_multiscale(depth_est, low1, low2, low3, depth_gt, mask,
                              variance_focus, **kw))
    ref = _reference(depth_est, low1, low2, low3, depth_gt, mask, variance_focus)
    assert jnp.allclose(loss, ref, rtol=rtol, atol=atol), (shape, loss, ref)


if __name__ == "__main__":
    key = jax.random.PRNGKey(0)
    k0, k1, k2 = jax.random.split(key, 3)
    # Small NCHW case matching the PyTorch module's depth-map layout.
    _check((2, 1, 16, 16), k0)
    # Ragged numel (not a multiple of 128) exercising the wrapper pad path.
    _check((2, 1, 16, 15), k1)
    # Multi-block / multi-chunk case: total_blocks=3, num_chunks=2 so the clamped
    # duplicate tail block, the index-map clamp and the gidx mask are exercised.
    _check((2, 1, 45, 128), k2, block_rows=32, num_chunks=2)
    print("KERNEL_OK")
</pallas_src>

<mosaic_0001>
module attributes {stable_mosaic.version = 11 : i64} {
  func.func @_silog_partial_kernel(%arg0: i32, %arg1: i32, %arg2: memref<1xi32, #tpu.memory_space<smem>>, %arg3: memref<32x128xf32, #tpu.memory_space<vmem>>, %arg4: memref<32x128xf32, #tpu.memory_space<vmem>>, %arg5: memref<32x128xi8, #tpu.memory_space<vmem>>, %arg6: memref<1x3x8x128xf32, #tpu.memory_space<vmem>>) attributes {dimension_semantics = [#tpu.dimension_semantics<parallel>, #tpu.dimension_semantics<arbitrary>], iteration_bounds = array<i64: 1, 1>, scalar_prefetch = 1 : i64, scratch_operands = 0 : i64, tpu.core_type = #tpu.core_type<tc>, window_params = [{transform_indices = @transform_0, window_bounds = array<i64: 32, 128>}, {transform_indices = @transform_1, window_bounds = array<i64: 32, 128>}, {transform_indices = @transform_2, window_bounds = array<i64: 32, 128>}, {transform_indices = @transform_3, window_bounds = array<i64: 1, 3, 8, 128>}]} {
    %c0_i32 = arith.constant 0 : i32
    %0 = arith.cmpi eq, %arg1, %c0_i32 : i32
    %1 = arith.extui %0 : i1 to i32
    %c0_i32_0 = arith.constant 0 : i32
    %2 = arith.cmpi ne, %1, %c0_i32_0 : i32
    scf.if %2 {
      %cst = arith.constant 0.000000e+00 : f32
      %14 = vector.broadcast %cst : f32 to vector<1x3x8x128xf32>
      %c0_6 = arith.constant 0 : index
      %c0_7 = arith.constant 0 : index
      %c0_8 = arith.constant 0 : index
      %c0_9 = arith.constant 0 : index
      %15 = vector.load %arg6[%c0_6, %c0_7, %c0_8, %c0_9] : memref<1x3x8x128xf32, #tpu.memory_space<vmem>>, vector<1x3x8x128xf32>
      tpu.vector_store %arg6[%c0_6, %c0_7, %c0_8, %c0_9], %14 {strides = array<i32>} : memref<1x3x8x128xf32, #tpu.memory_space<vmem>>, vector<1x3x8x128xf32>,
    } else {
    }
    %c1_i32 = arith.constant 1 : i32
    %3 = arith.muli %arg0, %c1_i32 : i32
    %4 = arith.addi %3, %arg1 : i32
    %c0 = arith.constant 0 : index
    %c0_1 = arith.constant 0 : index
    %5 = vector.load %arg5[%c0, %c0_1] : memref<32x128xi8, #tpu.memory_space<vmem>>, vector<32x128xi8>
    %c0_i8 = arith.constant 0 : i8
    %6 = vector.broadcast %c0_i8 : i8 to vector<32x128xi8>
    %7 = arith.cmpi ne, %5, %6 : vector<32x128xi8>
    %c0_i32_2 = arith.constant 0 : i32
    %8 = arith.cmpi slt, %4, %c0_i32_2 : i32
    %9 = arith.extui %8 : i1 to i32
    %c0_i32_3 = arith.constant 0 : i32
    %10 = arith.cmpi ne, %9, %c0_i32_3 : i32
    scf.if %10 {
      %14 = arith.extui %7 : vector<32x128xi1> to vector<32x128xi32>
      %15 = arith.sitofp %14 : vector<32x128xi32> to vector<32x128xf32>
      %c0_6 = arith.constant 0 : index
      %c0_7 = arith.constant 0 : index
      %16 = vector.load %arg4[%c0_6, %c0_7] : memref<32x128xf32, #tpu.memory_space<vmem>>, vector<32x128xf32>
      %cst = arith.constant 1.000000e+00 : f32
      %17 = vector.broadcast %cst : f32 to vector<32x128xf32>
      %18 = arith.select %7, %16, %17 : vector<32x128xi1>, vector<32x128xf32>
      %19 = math.log %18 : vector<32x128xf32>
      %c0_8 = arith.constant 0 : index
      %c0_9 = arith.constant 0 : index
      %20 = vector.load %arg3[%c0_8, %c0_9] : memref<32x128xf32, #tpu.memory_space<vmem>>, vector<32x128xf32>
      %cst_10 = arith.constant 1.000000e+00 : f32
      %21 = vector.broadcast %cst_10 : f32 to vector<32x128xf32>
      %22 = arith.select %7, %20, %21 : vector<32x128xi1>, vector<32x128xf32>
      %23 = math.log %22 : vector<32x128xf32>
      %24 = arith.subf %23, %19 : vector<32x128xf32>
      %25 = arith.mulf %15, %24 : vector<32x128xf32>
      %c0_11 = arith.constant 0 : index
      %c0_12 = arith.constant 0 : index
      %c0_13 = arith.constant 0 : index
      %c0_14 = arith.constant 0 : index
      %26 = vector.load %arg6[%c0_11, %c0_12, %c0_13, %c0_14] : memref<1x3x8x128xf32, #tpu.memory_space<vmem>>, vector<1x1x8x128xf32>
      %27 = vector.shape_cast %26 : vector<1x1x8x128xf32> to vector<8x128xf32>
      %28 = vector.shape_cast %15 : vector<32x128xf32> to vector<4x8x128xf32>
      %cst_15 = arith.constant dense<0.000000e+00> : vector<8x128xf32>
      %29 = vector.multi_reduction <add>, %28, %cst_15 [0] : vector<4x8x128xf32> to vector<8x128xf32>
      %30 = arith.addf %27, %29 : vector<8x128xf32>
      %c0_16 = arith.constant 0 : index
      %c0_17 = arith.constant 0 : index
      %c0_18 = arith.constant 0 : index
      %c0_19 = arith.constant 0 : index
      %31 = vector.load %arg6[%c0_16, %c0_17, %c0_18, %c0_19] : memref<1x3x8x128xf32, #tpu.memory_space<vmem>>, vector<1x1x8x128xf32>
      %32 = vector.shape_cast %31 : vector<1x1x8x128xf32> to vector<8x128xf32>
      %33 = vector.shape_cast %30 : vector<8x128xf32> to vector<1x1x8x128xf32>
      tpu.vector_store %arg6[%c0_16, %c0_17, %c0_18, %c0_19], %33 {strides = array<i32>} : memref<1x3x8x128xf32, #tpu.memory_space<vmem>>, vector<1x1x8x128xf32>,
      %c0_20 = arith.constant 0 : index
      %c1 = arith.constant 1 : index
      %c0_21 = arith.constant 0 : index
      %c0_22 = arith.constant 0 : index
      %34 = vector.load %arg6[%c0_20, %c1, %c0_21, %c0_22] : memref<1x3x8x128xf32, #tpu.memory_space<vmem>>, vector<1x1x8x128xf32>
      %35 = vector.shape_cast %34 : vector<1x1x8x128xf32> to vector<8x128xf32>
      %36 = vector.shape_cast %25 : vector<32x128xf32> to vector<4x8x128xf32>
      %cst_23 = arith.constant dense<0.000000e+00> : vector<8x128xf32>
      %37 = vector.multi_reduction <add>, %36, %cst_23 [0] : vector<4x8x128xf32> to vector<8x128xf32>
      %38 = arith.addf %35, %37 : vector<8x128xf32>
      %c0_24 = arith.constant 0 : index
      %c1_25 = arith.constant 1 : index
      %c0_26 = arith.constant 0 : index
      %c0_27 = arith.constant 0 : index
      %39 = vector.load %arg6[%c0_24, %c1_25, %c0_26, %c0_27] : memref<1x3x8x128xf32, #tpu.memory_space<vmem>>, vector<1x1x8x128xf32>
      %40 = vector.shape_cast %39 : vector<1x1x8x128xf32> to vector<8x128xf32>
      %41 = vector.shape_cast %38 : vector<8x128xf32> to vector<1x1x8x128xf32>
      tpu.vector_store %arg6[%c0_24, %c1_25, %c0_26, %c0_27], %41 {strides = array<i32>} : memref<1x3x8x128xf32, #tpu.memory_space<vmem>>, vector<1x1x8x128xf32>,
      %c0_28 = arith.constant 0 : index
      %c2 = arith.constant 2 : index
      %c0_29 = arith.constant 0 : index
      %c0_30 = arith.constant 0 : index
      %42 = vector.load %arg6[%c0_28, %c2, %c0_29, %c0_30] : memref<1x3x8x128xf32, #tpu.memory_space<vmem>>, vector<1x1x8x128xf32>
      %43 = vector.shape_cast %42 : vector<1x1x8x128xf32> to vector<8x128xf32>
      %44 = arith.mulf %25, %25 : vector<32x128xf32>
      %45 = vector.shape_cast %44 : vector<32x128xf32> to vector<4x8x128xf32>
      %cst_31 = arith.constant dense<0.000000e+00> : vector<8x128xf32>
      %46 = vector.multi_reduction <add>, %45, %cst_31 [0] : vector<4x8x128xf32> to vector<8x128xf32>
      %47 = arith.addf %43, %46 : vector<8x128xf32>
      %c0_32 = arith.constant 0 : index
      %c2_33 = arith.constant 2 : index
      %c0_34 = arith.constant 0 : index
      %c0_35 = arith.constant 0 : index
      %48 = vector.load %arg6[%c0_32, %c2_33, %c0_34, %c0_35] : memref<1x3x8x128xf32, #tpu.memory_space<vmem>>, vector<1x1x8x128xf32>
      %49 = vector.shape_cast %48 : vector<1x1x8x128xf32> to vector<8x128xf32>
      %50 = vector.shape_cast %47 : vector<8x128xf32> to vector<1x1x8x128xf32>
      tpu.vector_store %arg6[%c0_32, %c2_33, %c0_34, %c0_35], %50 {strides = array<i32>} : memref<1x3x8x128xf32, #tpu.memory_space<vmem>>, vector<1x1x8x128xf32>,
    } else {
    }
    %c0_i32_4 = arith.constant 0 : i32
    %11 = arith.cmpi sge, %4, %c0_i32_4 : i32
    %12 = arith.extui %11 : i1 to i32
    %c0_i32_5 = arith.constant 0 : i32
    %13 = arith.cmpi ne, %12, %c0_i32_5 : i32
    scf.if %13 {
      %14 = tpu.iota {dimensions = array<i32: 0>} : vector<32x128xi32>
      %15 = tpu.iota {dimensions = array<i32: 1>} : vector<32x128xi32>
      %c32_i32 = arith.constant 32 : i32
      %16 = arith.muli %4, %c32_i32 : i32
      %17 = vector.broadcast %16 : i32 to vector<32x128xi32>
      %18 = arith.addi %14, %17 : vector<32x128xi32>
      %c128_i32 = arith.constant 128 : i32
      %19 = vector.broadcast %c128_i32 : i32 to vector<32x128xi32>
      %20 = arith.muli %18, %19 : vector<32x128xi32>
      %21 = arith.addi %20, %15 : vector<32x128xi32>
      %c0_6 = arith.constant 0 : index
      %22 = memref.load %arg2[%c0_6] : memref<1xi32, #tpu.memory_space<smem>>
      %23 = vector.broadcast %22 : i32 to vector<32x128xi32>
      %24 = arith.cmpi slt, %21, %23 : vector<32x128xi32>
      %25 = arith.andi %7, %24 : vector<32x128xi1>
      %26 = arith.extui %25 : vector<32x128xi1> to vector<32x128xi32>
      %27 = arith.sitofp %26 : vector<32x128xi32> to vector<32x128xf32>
      %c0_7 = arith.constant 0 : index
      %c0_8 = arith.constant 0 : index
      %28 = vector.load %arg4[%c0_7, %c0_8] : memref<32x128xf32, #tpu.memory_space<vmem>>, vector<32x128xf32>
      %cst = arith.constant 1.000000e+00 : f32
      %29 = vector.broadcast %cst : f32 to vector<32x128xf32>
      %30 = arith.select %25, %28, %29 : vector<32x128xi1>, vector<32x128xf32>
      %31 = math.log %30 : vector<32x128xf32>
      %c0_9 = arith.constant 0 : index
      %c0_10 = arith.constant 0 : index
      %32 = vector.load %arg3[%c0_9, %c0_10] : memref<32x128xf32, #tpu.memory_space<vmem>>, vector<32x128xf32>
      %cst_11 = arith.constant 1.000000e+00 : f32
      %33 = vector.broadcast %cst_11 : f32 to vector<32x128xf32>
      %34 = arith.select %25, %32, %33 : vector<32x128xi1>, vector<32x128xf32>
      %35 = math.log %34 : vector<32x128xf32>
      %36 = arith.subf %35, %31 : vector<32x128xf32>
      %37 = arith.mulf %27, %36 : vector<32x128xf32>
      %c0_12 = arith.constant 0 : index
      %c0_13 = arith.constant 0 : index
      %c0_14 = arith.constant 0 : index
      %c0_15 = arith.constant 0 : index
      %38 = vector.load %arg6[%c0_12, %c0_13, %c0_14, %c0_15] : memref<1x3x8x128xf32, #tpu.memory_space<vmem>>, vector<1x1x8x128xf32>
      %39 = vector.shape_cast %38 : vector<1x1x8x128xf32> to vector<8x128xf32>
      %40 = vector.shape_cast %27 : vector<32x128xf32> to vector<4x8x128xf32>
      %cst_16 = arith.constant dense<0.000000e+00> : vector<8x128xf32>
      %41 = vector.multi_reduction <add>, %40, %cst_16 [0] : vector<4x8x128xf32> to vector<8x128xf32>
      %42 = arith.addf %39, %41 : vector<8x128xf32>
      %c0_17 = arith.constant 0 : index
      %c0_18 = arith.constant 0 : index
      %c0_19 = arith.constant 0 : index
      %c0_20 = arith.constant 0 : index
      %43 = vector.load %arg6[%c0_17, %c0_18, %c0_19, %c0_20] : memref<1x3x8x128xf32, #tpu.memory_space<vmem>>, vector<1x1x8x128xf32>
      %44 = vector.shape_cast %43 : vector<1x1x8x128xf32> to vector<8x128xf32>
      %45 = vector.shape_cast %42 : vector<8x128xf32> to vector<1x1x8x128xf32>
      tpu.vector_store %arg6[%c0_17, %c0_18, %c0_19, %c0_20], %45 {strides = array<i32>} : memref<1x3x8x128xf32, #tpu.memory_space<vmem>>, vector<1x1x8x128xf32>,
      %c0_21 = arith.constant 0 : index
      %c1 = arith.constant 1 : index
      %c0_22 = arith.constant 0 : index
      %c0_23 = arith.constant 0 : index
      %46 = vector.load %arg6[%c0_21, %c1, %c0_22, %c0_23] : memref<1x3x8x128xf32, #tpu.memory_space<vmem>>, vector<1x1x8x128xf32>
      %47 = vector.shape_cast %46 : vector<1x1x8x128xf32> to vector<8x128xf32>
      %48 = vector.shape_cast %37 : vector<32x128xf32> to vector<4x8x128xf32>
      %cst_24 = arith.constant dense<0.000000e+00> : vector<8x128xf32>
      %49 = vector.multi_reduction <add>, %48, %cst_24 [0] : vector<4x8x128xf32> to vector<8x128xf32>
      %50 = arith.addf %47, %49 : vector<8x128xf32>
      %c0_25 = arith.constant 0 : index
      %c1_26 = arith.constant 1 : index
      %c0_27 = arith.constant 0 : index
      %c0_28 = arith.constant 0 : index
      %51 = vector.load %arg6[%c0_25, %c1_26, %c0_27, %c0_28] : memref<1x3x8x128xf32, #tpu.memory_space<vmem>>, vector<1x1x8x128xf32>
      %52 = vector.shape_cast %51 : vector<1x1x8x128xf32> to vector<8x128xf32>
      %53 = vector.shape_cast %50 : vector<8x128xf32> to vector<1x1x8x128xf32>
      tpu.vector_store %arg6[%c0_25, %c1_26, %c0_27, %c0_28], %53 {strides = array<i32>} : memref<1x3x8x128xf32, #tpu.memory_space<vmem>>, vector<1x1x8x128xf32>,
      %c0_29 = arith.constant 0 : index
      %c2 = arith.constant 2 : index
      %c0_30 = arith.constant 0 : index
      %c0_31 = arith.constant 0 : index
      %54 = vector.load %arg6[%c0_29, %c2, %c0_30, %c0_31] : memref<1x3x8x128xf32, #tpu.memory_space<vmem>>, vector<1x1x8x128xf32>
      %55 = vector.shape_cast %54 : vector<1x1x8x128xf32> to vector<8x128xf32>
      %56 = arith.mulf %37, %37 : vector<32x128xf32>
      %57 = vector.shape_cast %56 : vector<32x128xf32> to vector<4x8x128xf32>
      %cst_32 = arith.constant dense<0.000000e+00> : vector<8x128xf32>
      %58 = vector.multi_reduction <add>, %57, %cst_32 [0] : vector<4x8x128xf32> to vector<8x128xf32>
      %59 = arith.addf %55, %58 : vector<8x128xf32>
      %c0_33 = arith.constant 0 : index
      %c2_34 = arith.constant 2 : index
      %c0_35 = arith.constant 0 : index
      %c0_36 = arith.constant 0 : index
      %60 = vector.load %arg6[%c0_33, %c2_34, %c0_35, %c0_36] : memref<1x3x8x128xf32, #tpu.memory_space<vmem>>, vector<1x1x8x128xf32>
      %61 = vector.shape_cast %60 : vector<1x1x8x128xf32> to vector<8x128xf32>
      %62 = vector.shape_cast %59 : vector<8x128xf32> to vector<1x1x8x128xf32>
      tpu.vector_store %arg6[%c0_33, %c2_34, %c0_35, %c0_36], %62 {strides = array<i32>} : memref<1x3x8x128xf32, #tpu.memory_space<vmem>>, vector<1x1x8x128xf32>,
    } else {
    }
    return
  }
  func.func @transform_0(%arg0: i32, %arg1: i32, %arg2: memref<1xi32, #tpu.memory_space<smem>>) -> (i32, i32) {
    %c1_i32 = arith.constant 1 : i32
    %0 = arith.muli %arg0, %c1_i32 : i32
    %1 = arith.addi %0, %arg1 : i32
    %c0_i32 = arith.constant 0 : i32
    %2 = arith.minsi %1, %c0_i32 : i32
    %c0_i32_0 = arith.constant 0 : i32
    %c0_i32_1 = arith.constant 0 : i32
    return %2, %c0_i32_0 : i32, i32
  }
  func.func @transform_1(%arg0: i32, %arg1: i32, %arg2: memref<1xi32, #tpu.memory_space<smem>>) -> (i32, i32) {
    %c1_i32 = arith.constant 1 : i32
    %0 = arith.muli %arg0, %c1_i32 : i32
    %1 = arith.addi %0, %arg1 : i32
    %c0_i32 = arith.constant 0 : i32
    %2 = arith.minsi %1, %c0_i32 : i32
    %c0_i32_0 = arith.constant 0 : i32
    %c0_i32_1 = arith.constant 0 : i32
    return %2, %c0_i32_0 : i32, i32
  }
  func.func @transform_2(%arg0: i32, %arg1: i32, %arg2: memref<1xi32, #tpu.memory_space<smem>>) -> (i32, i32) {
    %c1_i32 = arith.constant 1 : i32
    %0 = arith.muli %arg0, %c1_i32 : i32
    %1 = arith.addi %0, %arg1 : i32
    %c0_i32 = arith.constant 0 : i32
    %2 = arith.minsi %1, %c0_i32 : i32
    %c0_i32_0 = arith.constant 0 : i32
    %c0_i32_1 = arith.constant 0 : i32
    return %2, %c0_i32_0 : i32, i32
  }
  func.func @transform_3(%arg0: i32, %arg1: i32, %arg2: memref<1xi32, #tpu.memory_space<smem>>) -> (i32, i32, i32, i32) {
    %c0_i32 = arith.constant 0 : i32
    %c0_i32_0 = arith.constant 0 : i32
    %c0_i32_1 = arith.constant 0 : i32
    %c0_i32_2 = arith.constant 0 : i32
    return %arg0, %c0_i32, %c0_i32_0, %c0_i32_1 : i32, i32, i32, i32
  }
}

</mosaic_0001>

<llo_original>
// kernel: tpu_custom_call.1
$region0: #{tpu_custom_call.1}
  #allocation0 [shape = 'u32[]', space=smem, size = 0x4, offset = 0x4, fixed_abs, tag = 'smem constant byte address 0x4 - core index']
  #allocation1 [shape = 'u32[144,128]{1,0:T(1,128)}', space=vmem, size = 0x12000, scoped, tag = 'internal scratch']
  #allocation2 [shape = 's32[1]{0}', space=sflag, size = 0x4, scoped, tag = 'scoped memory for tpu_custom_call.1']
  #allocation3 [shape = 's32[1]{0:T(128)S(6)}', space=smem, size = 0x200, scoped, tag = 'prefetched SMEM operand 0']
  %s0 = inlined_call_operand.<no memory space> [shape: s32[1], index: 0, kind: input, shape index: {}]
  %s1 = inlined_call_operand.hbm [shape: f32[4,128], index: 1, kind: input, shape index: {}]
  %s2 = inlined_call_operand.hbm [shape: f32[4,128], index: 2, kind: input, shape index: {}]
  %s3 = inlined_call_operand.vmem [shape: s8[4,128], index: 3, kind: input, shape index: {}]
  %s4 = inlined_call_operand.hbm [shape: f32[1,3,8,128], index: 4, kind: output, shape index: {}]
  %s5 = sld [smem:[#allocation0]]
  $region42: #{tpu_custom_call.1} parent=0
    _
  %s7 = ssub.s32 1, %s5
  %s8 = scalar_select 0, %s7, %s5
  %9 = sst [smem:[#allocation3]] %s0
  $region1: #{tpu_custom_call.1} parent=0
    #allocation4 [shape = 'u8[16384]{0}', space=vmem, size = 0x4000, scoped, tag = 'input window, operand 1, single buffered']
    #allocation5 [shape = 's32[1]{0}', space=sflag, size = 0x4, scoped, tag = 'scoped memory for tpu_custom_call.1']
    #allocation6 [shape = 's32[1]{0}', space=sflag, size = 0x4, scoped, tag = 'scoped memory for tpu_custom_call.1']
    #allocation7 [shape = 'u8[16384]{0}', space=vmem, size = 0x4000, scoped, tag = 'input window, operand 2, single buffered']
    #allocation8 [shape = 's32[1]{0}', space=sflag, size = 0x4, scoped, tag = 'scoped memory for tpu_custom_call.1']
    #allocation9 [shape = 'u8[12288]{0}', space=vmem, size = 0x3000, scoped, tag = 'output window, operand 0, single buffered']
    %10 = vsyncpa [#allocation5], 0
    %11 = vsyncpa [#allocation8], 0
    %12 = vsyncpa [#allocation6], 0
    // Predicated region
    $region2: #{tpu_custom_call.1} parent=1 // pred_check
      _
    $region3: #{tpu_custom_call.1} parent=1 // pred_check_branch
      %14 = sbr.rel (0) target = $region5
    $region4: #{tpu_custom_call.1} parent=1 // pred_region
      %s15 = sadd.s32 0, 0
      %p16 = scmp.lt.s32.totalorder %s15, 0
      %s17 = scalar_select %p16, %s15, 0
      %s18 = smul.u32 8, %s17
      %s19 = ssub.s32 1, %s18
      %s20 = smul.u32 64, %s19
      %s22 = ssub.s32 512, %s20
      %23 = vsyncadd [#allocation5], %s22
      %p24 = scmp.ne.s32.totalorder 0, %s20
      %s25 = smul.addr %s18, 64
      %s26 = scalar_lea.hbm %s1, %s25
      %s27 = smul.u32 4, %s19
      %s28 = sshll.u32 [#allocation4], 4
      %s29 = int_to_ptr.vmem [resolvable:$true] %s28
      %s30 = sshll.u32 %s27, 4
      %34 = dma.hbm_to_vmem [thread:$0]  (%p24), %s26, %s30, %s29, [#allocation5], 64, 64, 4
    $region5: #{tpu_custom_call.1} parent=1 // pred_fallthru
      _
    // Predicated region
    $region6: #{tpu_custom_call.1} parent=1 // pred_check
      _
    $region7: #{tpu_custom_call.1} parent=1 // pred_check_branch
      %36 = sbr.rel (0) target = $region9
    $region8: #{tpu_custom_call.1} parent=1 // pred_region
      %s37 = sadd.s32 0, 0
      %p38 = scmp.lt.s32.totalorder %s37, 0
      %s39 = scalar_select %p38, %s37, 0
      %s40 = smul.u32 8, %s39
      %s41 = ssub.s32 1, %s40
      %s42 = smul.u32 64, %s41
      %s44 = ssub.s32 512, %s42
      %45 = vsyncadd [#allocation8], %s44
      %p46 = scmp.ne.s32.totalorder 0, %s42
      %s47 = smul.addr %s40, 64
      %s48 = scalar_lea.hbm %s2, %s47
      %s49 = smul.u32 4, %s41
      %s50 = sshll.u32 [#allocation7], 4
      %s51 = int_to_ptr.vmem [resolvable:$true] %s50
      %s52 = sshll.u32 %s49, 4
      %56 = dma.hbm_to_vmem [thread:$0]  (%p46), %s48, %s52, %s51, [#allocation8], 64, 64, 4
    $region9: #{tpu_custom_call.1} parent=1 // pred_fallthru
      _
    // Predicated region
    $region10: #{tpu_custom_call.1} parent=1 // pred_check
      _
    $region11: #{tpu_custom_call.1} parent=1 // pred_check_branch
      %58 = sbr.rel (0) target = $region13
    $region12: #{tpu_custom_call.1} parent=1 // pred_region
      %s59 = sadd.s32 0, 0
      %p60 = scmp.lt.s32.totalorder %s59, 0
      %s61 = scalar_select %p60, %s59, 0
      %s62 = smul.u32 8, %s61
      %s63 = ssub.s32 1, %s62
      %s64 = smul.u32 16, %s63
      %p65 = scmp.lt.s32.totalorder %s62, 0
      %s66 = scalar_select %p65, %s62, 0
      %s67 = scalar_lea.vmem %s3, %s66
      %s68 = sadd.s32 0, 0
      %p69 = scmp.lt.s32.totalorder %s68, 0
      %s70 = scalar_select %p69, %s68, 0
      %s71 = smul.u32 8, %s70
      %s72 = ssub.s32 1, %s71
      %s73 = smul.u32 16, %s72
    $region13: #{tpu_custom_call.1} parent=1 // pred_fallthru
      _
    // Predicated region
    $region14: #{tpu_custom_call.1} parent=1 // pred_check
      _
    $region15: #{tpu_custom_call.1} parent=1 // pred_check_branch
      %75 = sbr.rel (0) target = $region17
    $region16: #{tpu_custom_call.1} parent=1 // pred_region
      %76 = dma.done [#allocation5], 512
    $region17: #{tpu_custom_call.1} parent=1 // pred_fallthru
      _
    // Predicated region
    $region18: #{tpu_custom_call.1} parent=1 // pred_check
      _
    $region19: #{tpu_custom_call.1} parent=1 // pred_check_branch
      %78 = sbr.rel (0) target = $region21
    $region20: #{tpu_custom_call.1} parent=1 // pred_region
      %79 = dma.done [#allocation8], 512
    $region21: #{tpu_custom_call.1} parent=1 // pred_fallthru
      _
    %s80 = sadd.s32 0, 0
    %p81 = scmp.lt.s32.totalorder %s80, 0
    %s82 = scalar_select %p81, %s80, 0
    %s83 = smul.u32 8, %s82
    %s84 = ssub.s32 1, %s83
    %s85 = smul.u32 16, %s84
    %p86 = scmp.lt.s32.totalorder %s83, 0
    %s87 = scalar_select %p86, %s83, 0
    %s88 = scalar_lea.vmem %s3, %s87
    %s89 = sadd.s32 0, 0
    %p90 = scmp.lt.s32.totalorder %s89, 0
    %s91 = scalar_select %p90, %s89, 0
    %s92 = smul.u32 8, %s91
    %s93 = ssub.s32 1, %s92
    %s94 = smul.u32 64, %s93
    %s95 = sadd.s32 0, 0
    %p96 = scmp.lt.s32.totalorder %s95, 0
    %s97 = scalar_select %p96, %s95, 0
    %s98 = smul.u32 8, %s97
    %s99 = ssub.s32 1, %s98
    %s100 = smul.u32 64, %s99
    %s101 = sadd.s32 0, 0
    %p102 = scmp.lt.s32.totalorder %s101, 0
    %s103 = scalar_select %p102, %s101, 0
    %s104 = smul.u32 8, %s103
    %s105 = ssub.s32 1, %s104
    %s106 = smul.u32 16, %s105
    %p107 = scmp.lt.s32.totalorder %s104, 0
    %s108 = scalar_select %p107, %s104, 0
    %s109 = scalar_lea.vmem %s3, %s108
    %s110 = sadd.s32 0, 0
    %p111 = scmp.lt.s32.totalorder %s110, 0
    %s112 = scalar_select %p111, %s110, 0
    %s113 = smul.u32 8, %s112
    %s114 = ssub.s32 1, %s113
    %s115 = smul.u32 16, %s114
    %p118 = scmp.eq.s32.totalorder 0, 0
    // Predicated region
    $region22: #{tpu_custom_call.1} parent=1 // pred_check
      %p119 = pneg %p118
    $region23: #{tpu_custom_call.1} parent=1 // pred_check_branch
      %121 = sbr.rel (%p119) target = $region25
    $region24: #{tpu_custom_call.1} parent=1 // pred_region
      %122 = vst [vmem:[#allocation9] sm:$0xff] 0.0
      %123 = vst [vmem:[#allocation9 + $0x8] sm:$0xff] 0.0
      %124 = vst [vmem:[#allocation9 + $0x10] sm:$0xff] 0.0
    $region25: #{tpu_custom_call.1} parent=1 // pred_fallthru
      _
    %s125 = sadd.s32 0, 0
    %v126 = vld [vmem:[%s109] sm:$0x1]
    %v127 = vld [vmem:[%s109 + $0x1] sm:$0x1]
    %v128 = vld [vmem:[%s109 + $0x2] sm:$0x1]
    %v129 = vld [vmem:[%s109 + $0x3] sm:$0x1]
    %v130 = vld [vmem:[%s109 + $0x4] sm:$0x1]
    %v131 = vld [vmem:[%s109 + $0x5] sm:$0x1]
    %v132 = vld [vmem:[%s109 + $0x6] sm:$0x1]
    %v133 = vld [vmem:[%s109 + $0x7] sm:$0x1]
    %vm134 = vnez %v126
    %vm135 = vnez %v127
    %vm136 = vnez %v128
    %vm137 = vnez %v129
    %vm138 = vnez %v130
    %vm139 = vnez %v131
    %vm140 = vnez %v132
    %vm141 = vnez %v133
    %p142 = scmp.lt.s32.totalorder %s125, 0
    // Predicated region
    $region26: #{tpu_custom_call.1} parent=1 // pred_check
      %p143 = pneg %p142
    $region27: #{tpu_custom_call.1} parent=1 // pred_check_branch
      %145 = sbr.rel (%p143) target = $region29
    $region28: #{tpu_custom_call.1} parent=1 // pred_region
      %v146 = vsel %vm134, 16843009, 0
      %v147 = vsel %vm135, 16843009, 0
      %v148 = vsel %vm136, 16843009, 0
      %v149 = vsel %vm137, 16843009, 0
      %v150 = vsel %vm138, 16843009, 0
      %v151 = vsel %vm139, 16843009, 0
      %v152 = vsel %vm140, 16843009, 0
      %v153 = vsel %vm141, 16843009, 0
      %v154 = vunpack.c.0.s8 %v146
      %v155 = vunpack.c.0.s8 %v147
      %v156 = vunpack.c.0.s8 %v148
      %v157 = vunpack.c.0.s8 %v149
      %v158 = vunpack.c.0.s8 %v150
      %v159 = vunpack.c.0.s8 %v151
      %v160 = vunpack.c.0.s8 %v152
      %v161 = vunpack.c.0.s8 %v153
      %vm162 = vcmp.ne.s32.totalorder %v154, 0
      %vm163 = vcmp.ne.s32.totalorder %v155, 0
      %vm164 = vcmp.ne.s32.totalorder %v156, 0
      %vm165 = vcmp.ne.s32.totalorder %v157, 0
      %vm166 = vcmp.ne.s32.totalorder %v158, 0
      %vm167 = vcmp.ne.s32.totalorder %v159, 0
      %vm168 = vcmp.ne.s32.totalorder %v160, 0
      %vm169 = vcmp.ne.s32.totalorder %v161, 0
      %v170 = vsel %vm162, 1, 0
      %v171 = vsel %vm163, 1, 0
      %v172 = vsel %vm164, 1, 0
      %v173 = vsel %vm165, 1, 0
      %v174 = vsel %vm166, 1, 0
      %v175 = vsel %vm167, 1, 0
      %v176 = vsel %vm168, 1, 0
      %v177 = vsel %vm169, 1, 0
      %v178 = vcombine.low %v170, %v171
      %v179 = vcombine.low %v172, %v173
      %v180 = vcombine.low %v174, %v175
      %v181 = vcombine.low %v176, %v177
      %vm182 = vcmp.ne.s32.totalorder %v178, 0
      %vm183 = vcmp.ne.s32.totalorder %v179, 0
      %vm184 = vcmp.ne.s32.totalorder %v180, 0
      %vm185 = vcmp.ne.s32.totalorder %v181, 0
      %v186 = vsel %vm182, 1, 0
      %v187 = vsel %vm183, 1, 0
      %v188 = vsel %vm184, 1, 0
      %v189 = vsel %vm185, 1, 0
      %v190 = vcvt.s32.f32 %v186
      %v191 = vcvt.s32.f32 %v187
      %v192 = vcvt.s32.f32 %v188
      %v193 = vcvt.s32.f32 %v189
      %v194 = vld [vmem:[#allocation7] sm:$0xff]
      %v195 = vld [vmem:[#allocation7 + $0x8] sm:$0xff]
      %v196 = vld [vmem:[#allocation7 + $0x10] sm:$0xff]
      %v197 = vld [vmem:[#allocation7 + $0x18] sm:$0xff]
      %v198 = vsel %vm182, %v194, 1.0
      %v199 = vsel %vm183, %v195, 1.0
      %v200 = vsel %vm184, %v196, 1.0
      %v201 = vsel %vm185, %v197, 1.0
      %v202 = vlog2.pop %v198
      %v203 = vmul.f32 %v202, 0.6931472
      %v204 = vlog2.pop %v199
      %v205 = vmul.f32 %v204, 0.6931472
      %v206 = vlog2.pop %v200
      %v207 = vmul.f32 %v206, 0.6931472
      %v208 = vlog2.pop %v201
      %v209 = vmul.f32 %v208, 0.6931472
      %v210 = vld [vmem:[#allocation4] sm:$0xff]
      %v211 = vld [vmem:[#allocation4 + $0x8] sm:$0xff]
      %v212 = vld [vmem:[#allocation4 + $0x10] sm:$0xff]
      %v213 = vld [vmem:[#allocation4 + $0x18] sm:$0xff]
      %v214 = vsel %vm182, %v210, 1.0
      %v215 = vsel %vm183, %v211, 1.0
      %v216 = vsel %vm184, %v212, 1.0
      %v217 = vsel %vm185, %v213, 1.0
      %v218 = vlog2.pop %v214
      %v219 = vmul.f32 %v218, 0.6931472
      %v220 = vlog2.pop %v215
      %v221 = vmul.f32 %v220, 0.6931472
      %v222 = vlog2.pop %v216
      %v223 = vmul.f32 %v222, 0.6931472
      %v224 = vlog2.pop %v217
      %v225 = vmul.f32 %v224, 0.6931472
      %v226 = vsub.f32 %v219, %v203
      %v227 = vsub.f32 %v221, %v205
      %v228 = vsub.f32 %v223, %v207
      %v229 = vsub.f32 %v225, %v209
      %v230 = vmul.f32 %v190, %v226
      %v231 = vmul.f32 %v191, %v227
      %v232 = vmul.f32 %v192, %v228
      %v233 = vmul.f32 %v193, %v229
      %v234 = vld [vmem:[#allocation9] sm:$0xff]
      %v235 = vadd.f32 %v190, %v191
      %v236 = vadd.f32 %v235, %v192
      %v237 = vadd.f32 %v236, %v193
      %v238 = vadd.f32 %v234, %v237
      %239 = vst [vmem:[#allocation9] sm:$0xff] %v238
      %s240 = scalar_lea.vmem [#allocation9], 8
      %v241 = vld [vmem:[%s240] sm:$0xff]
      %v242 = vadd.f32 %v230, %v231
      %v243 = vadd.f32 %v242, %v232
      %v244 = vadd.f32 %v243, %v233
      %v245 = vadd.f32 %v241, %v244
      %246 = vst [vmem:[%s240] sm:$0xff] %v245
      %s247 = scalar_lea.vmem [#allocation9], 16
      %v248 = vld [vmem:[%s247] sm:$0xff]
      %v249 = vmul.f32 %v230, %v230
      %v250 = vmul.f32 %v231, %v231
      %v251 = vmul.f32 %v232, %v232
      %v252 = vmul.f32 %v233, %v233
      %v253 = vadd.f32 %v249, %v250
      %v254 = vadd.f32 %v253, %v251
      %v255 = vadd.f32 %v254, %v252
      %v256 = vadd.f32 %v248, %v255
      %257 = vst [vmem:[%s247] sm:$0xff] %v256
    $region29: #{tpu_custom_call.1} parent=1 // pred_fallthru
      _
    %p258 = scmp.ge.s32.totalorder %s125, 0
    // Predicated region
    $region30: #{tpu_custom_call.1} parent=1 // pred_check
      %p259 = pneg %p258
    $region31: #{tpu_custom_call.1} parent=1 // pred_check_branch
      %261 = sbr.rel (%p259) target = $region33
    $region32: #{tpu_custom_call.1} parent=1 // pred_region
      %v262 = vlaneseq
      %v263 = vshrl.u32 %v262, 7
      %v264 = vadd.s32 %v263, 8
      %v265 = vadd.s32 %v263, 16
      %v266 = vadd.s32 %v263, 24
      %v267 = vlaneseq
      %v268 = vand.u32 %v267, 127
      %s269 = smul.u32 %s125, 32
      %v270 = vstv %s269
      %v271 = vadd.s32 %v263, %v270
      %v272 = vadd.s32 %v264, %v270
      %v273 = vadd.s32 %v265, %v270
      %v274 = vadd.s32 %v266, %v270
      %v275 = vmul.u32 %v271, 128
      %v276 = vmul.u32 %v272, 128
      %v277 = vmul.u32 %v273, 128
      %v278 = vmul.u32 %v274, 128
      %v279 = vadd.s32 %v275, %v268
      %v280 = vadd.s32 %v276, %v268
      %v281 = vadd.s32 %v277, %v268
      %v282 = vadd.s32 %v278, %v268
      %s283 = sld [smem:[#allocation3]]
      %v284 = vstv %s283
      %vm285 = vcmp.lt.s32.totalorder %v279, %v284
      %vm286 = vcmp.lt.s32.totalorder %v280, %v284
      %vm287 = vcmp.lt.s32.totalorder %v281, %v284
      %vm288 = vcmp.lt.s32.totalorder %v282, %v284
      %v289 = vsel %vm285, 1, 0
      %v290 = vsel %vm286, 1, 0
      %v291 = vsel %vm287, 1, 0
      %v292 = vsel %vm288, 1, 0
      %v293 = vcombine.high %v289, %v289
      %v294 = vcombine.high %v290, %v290
      %v295 = vcombine.high %v291, %v291
      %v296 = vcombine.high %v292, %v292
      %vm297 = vcmp.ne.s32.totalorder %v293, 0
      %vm298 = vcmp.ne.s32.totalorder %v294, 0
      %vm299 = vcmp.ne.s32.totalorder %v295, 0
      %vm300 = vcmp.ne.s32.totalorder %v296, 0
      %v301 = vsel %vm297, 1, 0
      %v302 = vsel %vm298, 1, 0
      %v303 = vsel %vm299, 1, 0
      %v304 = vsel %vm300, 1, 0
      %v305 = vpack.c.b16 %v289, %v289
      %v306 = vpack.c.b8 %v305, %v305
      %v307 = vpack.c.b16 %v301, %v301
      %v308 = vpack.c.b8 %v307, %v307
      %v309 = vpack.c.b16 %v290, %v290
      %v310 = vpack.c.b8 %v309, %v309
      %v311 = vpack.c.b16 %v302, %v302
      %v312 = vpack.c.b8 %v311, %v311
      %v313 = vpack.c.b16 %v291, %v291
      %v314 = vpack.c.b8 %v313, %v313
      %v315 = vpack.c.b16 %v303, %v303
      %v316 = vpack.c.b8 %v315, %v315
      %v317 = vpack.c.b16 %v292, %v292
      %v318 = vpack.c.b8 %v317, %v317
      %v319 = vpack.c.b16 %v304, %v304
      %v320 = vpack.c.b8 %v319, %v319
      %vm321 = vnez %v306
      %vm322 = vnez %v308
      %vm323 = vnez %v310
      %vm324 = vnez %v312
      %vm325 = vnez %v314
      %vm326 = vnez %v316
      %vm327 = vnez %v318
      %vm328 = vnez %v320
      %vm329 = vmand %vm134, %vm321
      %vm330 = vmand %vm135, %vm322
      %vm331 = vmand %vm136, %vm323
      %vm332 = vmand %vm137, %vm324
      %vm333 = vmand %vm138, %vm325
      %vm334 = vmand %vm139, %vm326
      %vm335 = vmand %vm140, %vm327
      %vm336 = vmand %vm141, %vm328
      %v337 = vsel %vm329, 16843009, 0
      %v338 = vsel %vm330, 16843009, 0
      %v339 = vsel %vm331, 16843009, 0
      %v340 = vsel %vm332, 16843009, 0
      %v341 = vsel %vm333, 16843009, 0
      %v342 = vsel %vm334, 16843009, 0
      %v343 = vsel %vm335, 16843009, 0
      %v344 = vsel %vm336, 16843009, 0
      %v345 = vunpack.c.0.s8 %v337
      %v346 = vunpack.c.0.s8 %v338
      %v347 = vunpack.c.0.s8 %v339
      %v348 = vunpack.c.0.s8 %v340
      %v349 = vunpack.c.0.s8 %v341
      %v350 = vunpack.c.0.s8 %v342
      %v351 = vunpack.c.0.s8 %v343
      %v352 = vunpack.c.0.s8 %v344
      %vm353 = vcmp.ne.s32.totalorder %v345, 0
      %vm354 = vcmp.ne.s32.totalorder %v346, 0
      %vm355 = vcmp.ne.s32.totalorder %v347, 0
      %vm356 = vcmp.ne.s32.totalorder %v348, 0
      %vm357 = vcmp.ne.s32.totalorder %v349, 0
      %vm358 = vcmp.ne.s32.totalorder %v350, 0
      %vm359 = vcmp.ne.s32.totalorder %v351, 0
      %vm360 = vcmp.ne.s32.totalorder %v352, 0
      %v361 = vsel %vm353, 1, 0
      %v362 = vsel %vm354, 1, 0
      %v363 = vsel %vm355, 1, 0
      %v364 = vsel %vm356, 1, 0
      %v365 = vsel %vm357, 1, 0
      %v366 = vsel %vm358, 1, 0
      %v367 = vsel %vm359, 1, 0
      %v368 = vsel %vm360, 1, 0
      %v369 = vcombine.low %v361, %v362
      %v370 = vcombine.low %v363, %v364
      %v371 = vcombine.low %v365, %v366
      %v372 = vcombine.low %v367, %v368
      %vm373 = vcmp.ne.s32.totalorder %v369, 0
      %vm374 = vcmp.ne.s32.totalorder %v370, 0
      %vm375 = vcmp.ne.s32.totalorder %v371, 0
      %vm376 = vcmp.ne.s32.totalorder %v372, 0
      %v377 = vsel %vm373, 1, 0
      %v378 = vsel %vm374, 1, 0
      %v379 = vsel %vm375, 1, 0
      %v380 = vsel %vm376, 1, 0
      %v381 = vcvt.s32.f32 %v377
      %v382 = vcvt.s32.f32 %v378
      %v383 = vcvt.s32.f32 %v379
      %v384 = vcvt.s32.f32 %v380
      %v385 = vld [vmem:[#allocation7] sm:$0xff]
      %v386 = vld [vmem:[#allocation7 + $0x8] sm:$0xff]
      %v387 = vld [vmem:[#allocation7 + $0x10] sm:$0xff]
      %v388 = vld [vmem:[#allocation7 + $0x18] sm:$0xff]
      %v389 = vsel %vm373, %v385, 1.0
      %v390 = vsel %vm374, %v386, 1.0
      %v391 = vsel %vm375, %v387, 1.0
      %v392 = vsel %vm376, %v388, 1.0
      %v393 = vlog2.pop %v389
      %v394 = vmul.f32 %v393, 0.6931472
      %v395 = vlog2.pop %v390
      %v396 = vmul.f32 %v395, 0.6931472
      %v397 = vlog2.pop %v391
      %v398 = vmul.f32 %v397, 0.6931472
      %v399 = vlog2.pop %v392
      %v400 = vmul.f32 %v399, 0.6931472
      %v401 = vld [vmem:[#allocation4] sm:$0xff]
      %v402 = vld [vmem:[#allocation4 + $0x8] sm:$0xff]
      %v403 = vld [vmem:[#allocation4 + $0x10] sm:$0xff]
      %v404 = vld [vmem:[#allocation4 + $0x18] sm:$0xff]
      %v405 = vsel %vm373, %v401, 1.0
      %v406 = vsel %vm374, %v402, 1.0
      %v407 = vsel %vm375, %v403, 1.0
      %v408 = vsel %vm376, %v404, 1.0
      %v409 = vlog2.pop %v405
      %v410 = vmul.f32 %v409, 0.6931472
      %v411 = vlog2.pop %v406
      %v412 = vmul.f32 %v411, 0.6931472
      %v413 = vlog2.pop %v407
      %v414 = vmul.f32 %v413, 0.6931472
      %v415 = vlog2.pop %v408
      %v416 = vmul.f32 %v415, 0.6931472
      %v417 = vsub.f32 %v410, %v394
      %v418 = vsub.f32 %v412, %v396
      %v419 = vsub.f32 %v414, %v398
      %v420 = vsub.f32 %v416, %v400
      %v421 = vmul.f32 %v381, %v417
      %v422 = vmul.f32 %v382, %v418
      %v423 = vmul.f32 %v383, %v419
      %v424 = vmul.f32 %v384, %v420
      %v425 = vld [vmem:[#allocation9] sm:$0xff]
      %v426 = vadd.f32 %v381, %v382
      %v427 = vadd.f32 %v426, %v383
      %v428 = vadd.f32 %v427, %v384
      %v429 = vadd.f32 %v425, %v428
      %430 = vst [vmem:[#allocation9] sm:$0xff] %v429
      %s431 = scalar_lea.vmem [#allocation9], 8
      %v432 = vld [vmem:[%s431] sm:$0xff]
      %v433 = vadd.f32 %v421, %v422
      %v434 = vadd.f32 %v433, %v423
      %v435 = vadd.f32 %v434, %v424
      %v436 = vadd.f32 %v432, %v435
      %437 = vst [vmem:[%s431] sm:$0xff] %v436
      %s438 = scalar_lea.vmem [#allocation9], 16
      %v439 = vld [vmem:[%s438] sm:$0xff]
      %v440 = vmul.f32 %v421, %v421
      %v441 = vmul.f32 %v422, %v422
      %v442 = vmul.f32 %v423, %v423
      %v443 = vmul.f32 %v424, %v424
      %v444 = vadd.f32 %v440, %v441
      %v445 = vadd.f32 %v444, %v442
      %v446 = vadd.f32 %v445, %v443
      %v447 = vadd.f32 %v439, %v446
      %448 = vst [vmem:[%s438] sm:$0xff] %v447
    $region33: #{tpu_custom_call.1} parent=1 // pred_fallthru
      _
    // Predicated region
    $region34: #{tpu_custom_call.1} parent=1 // pred_check
      _
    $region35: #{tpu_custom_call.1} parent=1 // pred_check_branch
      %450 = sbr.rel (0) target = $region37
    $region36: #{tpu_custom_call.1} parent=1 // pred_region
      %s452 = ssub.s32 384, 384
      %453 = vsyncadd [#allocation6], %s452
      %s454 = sshll.u32 [#allocation9], 4
      %s455 = int_to_ptr.vmem [resolvable:$true] %s454
      %460 = dma.vmem_to_hbm [thread:$0]  %s455, 384, %s4, [#allocation6], 128, 128, 8
    $region37: #{tpu_custom_call.1} parent=1 // pred_fallthru
      _
    // Predicated region
    $region38: #{tpu_custom_call.1} parent=1 // pred_check
      _
    $region39: #{tpu_custom_call.1} parent=1 // pred_check_branch
      %462 = sbr.rel (0) target = $region41
    $region40: #{tpu_custom_call.1} parent=1 // pred_region
      %463 = dma.done [#allocation6], 384
    $region41: #{tpu_custom_call.1} parent=1 // pred_fallthru
      _
    %464 = vsyncpa [#allocation5], 1
    %465 = vsyncpa [#allocation8], 1
    %466 = vsyncpa [#allocation6], 1

</llo_original>
